<compile_context>
chip_gen: v6e
topology: v6e:2x2x1
jax: 0.10.0
libtpu: 0.0.40
codegen_flags: <defaults>
</compile_context>

<pallas_src>
import math
import functools

import jax
import jax.numpy as jnp
from jax import lax
from jax.experimental import pallas as pl
from jax.experimental.pallas import tpu as pltpu


def _layer_norm(x, gamma, beta, eps=1e-5):
    mean = jnp.mean(x, axis=-1, keepdims=True)
    var = jnp.mean((x - mean) ** 2, axis=-1, keepdims=True)
    return (x - mean) * lax.rsqrt(var + eps) * gamma + beta


def _vmem_limit_bytes():
    # ~3/4 of physical VMEM: ~48 MiB on v7x (64 MiB/TC), ~96 MiB on v5e/v6e.
    try:
        cap = pltpu.get_tpu_info().vmem_capacity_bytes
    except Exception:
        cap = 64 * 1024 * 1024
    return int(min(max(cap * 3 // 4, 32 * 1024 * 1024), 112 * 1024 * 1024))


def encoder_layer_kernel(x_q_ref, x_kv_ref,
                         wq_ref, wk_ref, wv_ref, wo_ref, w1_ref, w2_ref,
                         vecd_ref, bf1_ref,
                         *rest,
                         heads, compute_dtype, cache_kv, uniform_attn):
    if uniform_attn:
        mask_ref = None
        o_ref, k_scr, v_scr = rest
    else:
        mask_ref, o_ref, k_scr, v_scr = rest

    tq, D = x_q_ref.shape
    d_k = D // heads
    f32 = jnp.float32
    cd = lambda a: a.astype(compute_dtype)   # matmul-operand cast (no-op for f32)

    # Packed (9, D) small vectors: rows [bq*scale, bk, bv, bo, g1, be1, g2, be2, bf2].
    bq = vecd_ref[0:1]
    bk = vecd_ref[1:2]
    bv = vecd_ref[2:3]
    bo = vecd_ref[3:4]
    g1, be1 = vecd_ref[4:5], vecd_ref[5:6]
    g2, be2 = vecd_ref[6:7], vecd_ref[7:8]
    bf2 = vecd_ref[8:9]
    bf1 = bf1_ref[...]                       # (1, d_ff)

    # K/V projections over the full sequence, cached in VMEM scratch (bf16 by
    # default) across the q-tile axis when cache_kv, else recomputed per tile.
    def project_kv():
        x_kv = cd(x_kv_ref[...])
        if not uniform_attn:
            k_scr[...] = (jnp.dot(x_kv, wk_ref[...],
                                  preferred_element_type=f32) + bk
                          ).astype(k_scr.dtype)
        v_scr[...] = (jnp.dot(x_kv, wv_ref[...],
                              preferred_element_type=f32) + bv
                      ).astype(v_scr.dtype)

    if cache_kv:
        @pl.when(pl.program_id(1) == 0)
        def _():
            project_kv()
    else:
        project_kv()

    x_q = x_q_ref[...]                                               # (tq, D) f32
    v = v_scr[...]                                                   # (S, D) compute dtype

    if uniform_attn:
        # Module's mask=None path: every score is masked with -1e9, softmax is
        # uniform 1/S, so attention is just a mean of V over the sequence.
        concat = jnp.broadcast_to(
            jnp.mean(v.astype(f32), axis=0, keepdims=True), (tq, D))
    else:
        k = k_scr[...]                                               # (S, D)
        # 1/sqrt(d_k) is already folded into wq / bq on the host.
        q = cd(jnp.dot(cd(x_q), wq_ref[...],
                       preferred_element_type=f32) + bq)             # (tq, D)
        mask_add = mask_ref[...]                                     # (tq, S) 0 / -1e9, f32

        head_outs = []
        for h in range(heads):
            lo = h * d_k
            # Contract over d_k directly -- no materialized k.T.
            s = lax.dot_general(
                q[:, lo:lo + d_k], k[:, lo:lo + d_k],
                dimension_numbers=(((1,), (1,)), ((), ())),
                preferred_element_type=f32)                          # (tq, S)
            s = s + mask_add
            s = s - jnp.max(s, axis=-1, keepdims=True)
            p = jnp.exp(s)
            # approx reciprocal runs on the EUP slot; use approx=False if
            # bit-closer parity with torch softmax is required.
            p = p * pl.reciprocal(jnp.sum(p, axis=-1, keepdims=True), approx=True)
            head_outs.append(jnp.dot(cd(p), v[:, lo:lo + d_k],
                                     preferred_element_type=f32))
        concat = jnp.concatenate(head_outs, axis=-1)                 # (tq, D)

    # Single full-depth output projection (unfused from the head loop).
    attn = jnp.dot(cd(concat), wo_ref[...], preferred_element_type=f32) + bo

    # Residual + LayerNorm 1
    x1 = _layer_norm(x_q + attn, g1, be1)

    # Feedforward (dropout = identity in eval mode)
    h1 = jnp.dot(cd(x1), w1_ref[...], preferred_element_type=f32) + bf1
    h1 = jnp.maximum(h1, 0.0)
    ff = jnp.dot(cd(h1), w2_ref[...], preferred_element_type=f32) + bf2

    # Residual + LayerNorm 2
    o_ref[...] = _layer_norm(x1 + ff, g2, be2)


def encoder_layer(x, params, heads, mask=None, *, tq=None,
                  compute_dtype=jnp.bfloat16, cache_kv=True):
    B, S, D = x.shape
    DFF = params['w1'].shape[1]
    assert D % heads == 0
    d_k = D // heads

    if tq is None:
        tq = S if S <= 512 else 512
    assert S % tq == 0, "sequence length must be divisible by the q-tile size"
    n_q = S // tq

    uniform_attn = mask is None
    x = x.astype(jnp.float32)

    # Host-side prep: fold score scale into the Q projection, pre-cast the big
    # weight matrices to the MXU operand dtype, pack the small vectors.
    scale = 1.0 / math.sqrt(d_k)
    wq = (params['wq'] * scale).astype(compute_dtype)
    wk = params['wk'].astype(compute_dtype)
    wv = params['wv'].astype(compute_dtype)
    wo = params['wo'].astype(compute_dtype)
    w1 = params['w1'].astype(compute_dtype)
    w2 = params['w2'].astype(compute_dtype)

    vec_d = jnp.stack([params['bq'] * scale, params['bk'], params['bv'],
                       params['bo'], params['g1'], params['be1'],
                       params['g2'], params['be2'], params['bf2']],
                      axis=0).astype(jnp.float32)                    # (9, D)
    bf1 = params['bf1'].reshape(1, DFF).astype(jnp.float32)

    def const(shape):
        return pl.BlockSpec(shape, lambda b, q: (0,) * len(shape))

    in_specs = [
        pl.BlockSpec((None, tq, D), lambda b, q: (b, q, 0)),   # q-tile of x
        pl.BlockSpec((None, S, D), lambda b, q: (b, 0, 0)),    # full x for K/V
        const((D, D)), const((D, D)), const((D, D)), const((D, D)),
        const((D, DFF)), const((DFF, D)),
        const((9, D)), const((1, DFF)),
    ]
    inputs = [x, x, wq, wk, wv, wo, w1, w2, vec_d, bf1]

    if not uniform_attn:
        # Pre-convert to an additive bias: 0 where attended, -1e9 where masked
        # (kept in f32 so the -1e9 never goes through the bf16 operand cast).
        # TODO(synk): only a single (S, S) mask shared across the batch is
        # supported; per-batch (bs, S, S) masks are not.
        mask_add = jnp.where(mask.astype(jnp.float32) == 0.0,
                             jnp.float32(-1e9), jnp.float32(0.0))
        in_specs.append(pl.BlockSpec((tq, S), lambda b, q: (q, 0)))
        inputs.append(mask_add)

    kernel = functools.partial(encoder_layer_kernel, heads=heads,
                               compute_dtype=compute_dtype,
                               cache_kv=cache_kv,
                               uniform_attn=uniform_attn)

    return pl.pallas_call(
        kernel,
        out_shape=jax.ShapeDtypeStruct((B, S, D), jnp.float32),
        grid_spec=pltpu.PrefetchScalarGridSpec(
            num_scalar_prefetch=0,
            grid=(B, n_q),
            in_specs=in_specs,
            out_specs=pl.BlockSpec((None, tq, D), lambda b, q: (b, q, 0)),
            scratch_shapes=[pltpu.VMEM((S, D), compute_dtype),   # cached K
                            pltpu.VMEM((S, D), compute_dtype)],  # cached V
        ),
        compiler_params=pltpu.CompilerParams(
            dimension_semantics=("parallel",
                                 "arbitrary" if cache_kv else "parallel"),
            vmem_limit_bytes=_vmem_limit_bytes(),
        ),
    )(*inputs)


def reference_encoder_layer(x, p, heads, mask=None):
    """Pure-JAX f32 reference mirroring the PyTorch forward (eval mode)."""
    B, S, D = x.shape
    d_k = D // heads

    def lin(y, w, b):
        return y @ w + b

    q = lin(x, p['wq'], p['bq']).reshape(B, S, heads, d_k).transpose(0, 2, 1, 3)
    k = lin(x, p['wk'], p['bk']).reshape(B, S, heads, d_k).transpose(0, 2, 1, 3)
    v = lin(x, p['wv'], p['bv']).reshape(B, S, heads, d_k).transpose(0, 2, 1, 3)

    scores = jnp.einsum('bhqd,bhkd->bhqk', q, k) / math.sqrt(d_k)
    m = jnp.zeros((S, S), jnp.float32) if mask is None else mask
    scores = jnp.where(m[None, None, :, :] == 0, -1e9, scores)
    scores = jax.nn.softmax(scores, axis=-1)
    attn = jnp.einsum('bhqk,bhkd->bhqd', scores, v)
    concat = attn.transpose(0, 2, 1, 3).reshape(B, S, D)
    attn_out = lin(concat, p['wo'], p['bo'])

    def ln(y, g, b, eps=1e-5):
        mu = y.mean(-1, keepdims=True)
        var = ((y - mu) ** 2).mean(-1, keepdims=True)
        return (y - mu) / jnp.sqrt(var + eps) * g + b

    x1 = ln(x + attn_out, p['g1'], p['be1'])
    ff = lin(jnp.maximum(lin(x1, p['w1'], p['bf1']), 0.0), p['w2'], p['bf2'])
    return ln(x1 + ff, p['g2'], p['be2'])


def make_params(key, d_model, d_ff):
    ks = jax.random.split(key, 12)
    n = lambda k, shape, s=0.05: jax.random.normal(k, shape, jnp.float32) * s
    return {
        # linear weights in (in, out) layout
        'wq': n(ks[0], (d_model, d_model)),
        'wk': n(ks[1], (d_model, d_model)),
        'wv': n(ks[2], (d_model, d_model)),
        'wo': n(ks[3], (d_model, d_model)),
        'w1': n(ks[4], (d_model, d_ff)),
        'w2': n(ks[5], (d_ff, d_model)),
        'bq': n(ks[6], (d_model,)),
        'bk': n(ks[7], (d_model,)),
        'bv': n(ks[8], (d_model,)),
        'bo': n(ks[9], (d_model,)),
        'bf1': n(ks[10], (d_ff,)),
        'bf2': n(ks[11], (d_model,)),
        'g1': jnp.ones((d_model,), jnp.float32),
        'be1': jnp.zeros((d_model,), jnp.float32),
        'g2': jnp.ones((d_model,), jnp.float32),
        'be2': jnp.zeros((d_model,), jnp.float32),
    }


def _check(out, ref, tol, tag):
    err = float(jnp.max(jnp.abs(out - ref)))
    assert jnp.allclose(out, ref, atol=tol, rtol=tol), f"{tag}: max err {err}"


if __name__ == "__main__":
    HEADS, D, D_FF = 4, 32, 64
    key = jax.random.PRNGKey(0)
    kx, kp, kx2 = jax.random.split(key, 3)
    params = make_params(kp, D, D_FF)

    B, S = 2, 8
    x = jax.random.normal(kx, (B, S, D), jnp.float32)
    causal = jnp.tril(jnp.ones((S, S), jnp.float32))
    ref_none = reference_encoder_layer(x, params, HEADS, mask=None)
    ref_causal = reference_encoder_layer(x, params, HEADS, mask=causal)

    # 1) f32 operand path: tight parity with the PyTorch forward.
    out = jax.block_until_ready(
        encoder_layer(x, params, HEADS, mask=None, compute_dtype=jnp.float32))
    assert out.shape == (B, S, D)
    _check(out, ref_none, 2e-3, "f32 mask=None")
    out = jax.block_until_ready(
        encoder_layer(x, params, HEADS, mask=causal, compute_dtype=jnp.float32))
    _check(out, ref_causal, 2e-3, "f32 causal")

    # 2) default bf16 MXU-operand path (f32 accumulation): looser tolerance.
    out = jax.block_until_ready(encoder_layer(x, params, HEADS, mask=None))
    _check(out, ref_none, 3e-2, "bf16 mask=None")
    out = jax.block_until_ready(encoder_layer(x, params, HEADS, mask=causal))
    _check(out, ref_causal, 3e-2, "bf16 causal")

    # 3) longer sequence with q-tiling: cached K/V path and the recompute-K/V
    #    path (parallel q-tile axis, relevant for v7x megacore when B==1).
    S2 = 16
    x2 = jax.random.normal(kx2, (B, S2, D), jnp.float32)
    causal2 = jnp.tril(jnp.ones((S2, S2), jnp.float32))
    ref2 = reference_encoder_layer(x2, params, HEADS, mask=causal2)
    out = jax.block_until_ready(
        encoder_layer(x2, params, HEADS, mask=causal2, tq=8))
    _check(out, ref2, 3e-2, "tiled causal (cached K/V)")
    out = jax.block_until_ready(
        encoder_layer(x2, params, HEADS, mask=causal2, tq=8, cache_kv=False))
    _check(out, ref2, 3e-2, "tiled causal (recompute K/V, parallel q)")

    print("KERNEL_OK")
</pallas_src>

<mosaic_0001>
module attributes {stable_mosaic.version = 11 : i64} {
  func.func @encoder_layer_kernel(%arg0: i32, %arg1: i32, %arg2: memref<1x8x32xf32, #tpu.memory_space<vmem>>, %arg3: memref<1x8x32xf32, #tpu.memory_space<vmem>>, %arg4: memref<32x32xf32, #tpu.memory_space<vmem>>, %arg5: memref<32x32xf32, #tpu.memory_space<vmem>>, %arg6: memref<32x32xf32, #tpu.memory_space<vmem>>, %arg7: memref<32x32xf32, #tpu.memory_space<vmem>>, %arg8: memref<32x64xf32, #tpu.memory_space<vmem>>, %arg9: memref<64x32xf32, #tpu.memory_space<vmem>>, %arg10: memref<9x32xf32, #tpu.memory_space<vmem>>, %arg11: memref<1x64xf32, #tpu.memory_space<vmem>>, %arg12: memref<1x8x32xf32, #tpu.memory_space<vmem>>, %arg13: memref<8x32xf32, #tpu.memory_space<vmem>>, %arg14: memref<8x32xf32, #tpu.memory_space<vmem>>) attributes {dimension_semantics = [#tpu.dimension_semantics<parallel>, #tpu.dimension_semantics<arbitrary>], iteration_bounds = array<i64: 2, 1>, scalar_prefetch = 0 : i64, scratch_operands = 2 : i64, tpu.core_type = #tpu.core_type<tc>, window_params = [{transform_indices = @transform_0, window_bounds = array<i64: 1, 8, 32>}, {transform_indices = @transform_1, window_bounds = array<i64: 1, 8, 32>}, {pipeline_mode = #tpu.pipeline_mode<synchronous>, transform_indices = @transform_2, window_bounds = array<i64: 32, 32>}, {pipeline_mode = #tpu.pipeline_mode<synchronous>, transform_indices = @transform_3, window_bounds = array<i64: 32, 32>}, {pipeline_mode = #tpu.pipeline_mode<synchronous>, transform_indices = @transform_4, window_bounds = array<i64: 32, 32>}, {pipeline_mode = #tpu.pipeline_mode<synchronous>, transform_indices = @transform_5, window_bounds = array<i64: 32, 32>}, {pipeline_mode = #tpu.pipeline_mode<synchronous>, transform_indices = @transform_6, window_bounds = array<i64: 32, 64>}, {pipeline_mode = #tpu.pipeline_mode<synchronous>, transform_indices = @transform_7, window_bounds = array<i64: 64, 32>}, {pipeline_mode = #tpu.pipeline_mode<synchronous>, transform_indices = @transform_8, window_bounds = array<i64: 9, 32>}, {pipeline_mode = #tpu.pipeline_mode<synchronous>, transform_indices = @transform_9, window_bounds = array<i64: 1, 64>}, {transform_indices = @transform_10, window_bounds = array<i64: 1, 8, 32>}]} {
    %c2 = arith.constant 2 : index
    %c0 = arith.constant 0 : index
    %0 = vector.load %arg10[%c2, %c0] : memref<9x32xf32, #tpu.memory_space<vmem>>, vector<1x32xf32>
    %c3 = arith.constant 3 : index
    %c0_0 = arith.constant 0 : index
    %1 = vector.load %arg10[%c3, %c0_0] : memref<9x32xf32, #tpu.memory_space<vmem>>, vector<1x32xf32>
    %c4 = arith.constant 4 : index
    %c0_1 = arith.constant 0 : index
    %2 = vector.load %arg10[%c4, %c0_1] : memref<9x32xf32, #tpu.memory_space<vmem>>, vector<1x32xf32>
    %c5 = arith.constant 5 : index
    %c0_2 = arith.constant 0 : index
    %3 = vector.load %arg10[%c5, %c0_2] : memref<9x32xf32, #tpu.memory_space<vmem>>, vector<1x32xf32>
    %c6 = arith.constant 6 : index
    %c0_3 = arith.constant 0 : index
    %4 = vector.load %arg10[%c6, %c0_3] : memref<9x32xf32, #tpu.memory_space<vmem>>, vector<1x32xf32>
    %c7 = arith.constant 7 : index
    %c0_4 = arith.constant 0 : index
    %5 = vector.load %arg10[%c7, %c0_4] : memref<9x32xf32, #tpu.memory_space<vmem>>, vector<1x32xf32>
    %c8 = arith.constant 8 : index
    %c0_5 = arith.constant 0 : index
    %6 = vector.load %arg10[%c8, %c0_5] : memref<9x32xf32, #tpu.memory_space<vmem>>, vector<1x32xf32>
    %c0_6 = arith.constant 0 : index
    %c0_7 = arith.constant 0 : index
    %7 = vector.load %arg11[%c0_6, %c0_7] : memref<1x64xf32, #tpu.memory_space<vmem>>, vector<1x64xf32>
    %c0_i32 = arith.constant 0 : i32
    %8 = arith.cmpi eq, %arg1, %c0_i32 : i32
    %9 = arith.extui %8 : i1 to i32
    %c0_i32_8 = arith.constant 0 : i32
    %10 = arith.cmpi ne, %9, %c0_i32_8 : i32
    scf.if %10 {
      %c0_38 = arith.constant 0 : index
      %c0_39 = arith.constant 0 : index
      %c0_40 = arith.constant 0 : index
      %83 = vector.load %arg3[%c0_38, %c0_39, %c0_40] : memref<1x8x32xf32, #tpu.memory_space<vmem>>, vector<1x8x32xf32>
      %84 = vector.shape_cast %83 : vector<1x8x32xf32> to vector<8x32xf32>
      %c0_41 = arith.constant 0 : index
      %c0_42 = arith.constant 0 : index
      %85 = vector.load %arg6[%c0_41, %c0_42] : memref<32x32xf32, #tpu.memory_space<vmem>>, vector<32x32xf32>
      %cst_43 = arith.constant dense<0.000000e+00> : vector<8x32xf32>
      %86 = tpu.matmul %84, %85, %cst_43 {dimension_numbers = #tpu.dot_dimension_numbers<[1], [0], [0], [1], [0, 0, 1, 1], [], []>} : vector<8x32xf32>, vector<32x32xf32>, vector<8x32xf32> -> vector<8x32xf32>
      %87 = vector.broadcast %0 : vector<1x32xf32> to vector<8x32xf32>
      %88 = arith.addf %86, %87 : vector<8x32xf32>
      %c0_44 = arith.constant 0 : index
      %c0_45 = arith.constant 0 : index
      %89 = vector.load %arg14[%c0_44, %c0_45] : memref<8x32xf32, #tpu.memory_space<vmem>>, vector<8x32xf32>
      tpu.vector_store %arg14[%c0_44, %c0_45], %88 {strides = array<i32>} : memref<8x32xf32, #tpu.memory_space<vmem>>, vector<8x32xf32>,
    } else {
    }
    %c0_9 = arith.constant 0 : index
    %c0_10 = arith.constant 0 : index
    %c0_11 = arith.constant 0 : index
    %11 = vector.load %arg2[%c0_9, %c0_10, %c0_11] : memref<1x8x32xf32, #tpu.memory_space<vmem>>, vector<1x8x32xf32>
    %12 = vector.shape_cast %11 : vector<1x8x32xf32> to vector<8x32xf32>
    %c0_12 = arith.constant 0 : index
    %c0_13 = arith.constant 0 : index
    %13 = vector.load %arg14[%c0_12, %c0_13] : memref<8x32xf32, #tpu.memory_space<vmem>>, vector<8x32xf32>
    %cst = arith.constant dense<0.000000e+00> : vector<32xf32>
    %14 = vector.multi_reduction <add>, %13, %cst [0] : vector<8x32xf32> to vector<32xf32>
    %15 = vector.shape_cast %14 : vector<32xf32> to vector<1x32xf32>
    %cst_14 = arith.constant 8.000000e+00 : f32
    %16 = vector.broadcast %cst_14 : f32 to vector<1x32xf32>
    %17 = arith.divf %15, %16 : vector<1x32xf32>
    %18 = vector.shape_cast %17 : vector<1x32xf32> to vector<1x32xf32>
    %19 = vector.broadcast %18 : vector<1x32xf32> to vector<8x32xf32>
    %c0_15 = arith.constant 0 : index
    %c0_16 = arith.constant 0 : index
    %20 = vector.load %arg7[%c0_15, %c0_16] : memref<32x32xf32, #tpu.memory_space<vmem>>, vector<32x32xf32>
    %cst_17 = arith.constant dense<0.000000e+00> : vector<8x32xf32>
    %21 = tpu.matmul %19, %20, %cst_17 {dimension_numbers = #tpu.dot_dimension_numbers<[1], [0], [0], [1], [0, 0, 1, 1], [], []>} : vector<8x32xf32>, vector<32x32xf32>, vector<8x32xf32> -> vector<8x32xf32>
    %22 = vector.broadcast %1 : vector<1x32xf32> to vector<8x32xf32>
    %23 = arith.addf %21, %22 : vector<8x32xf32>
    %24 = arith.addf %12, %23 : vector<8x32xf32>
    %cst_18 = arith.constant dense<0.000000e+00> : vector<8xf32>
    %25 = vector.multi_reduction <add>, %24, %cst_18 [1] : vector<8x32xf32> to vector<8xf32>
    %26 = vector.shape_cast %25 : vector<8xf32> to vector<8x1xf32>
    %cst_19 = arith.constant 3.200000e+01 : f32
    %27 = vector.broadcast %cst_19 : f32 to vector<8x1xf32>
    %28 = arith.divf %26, %27 : vector<8x1xf32>
    %29 = vector.broadcast %28 : vector<8x1xf32> to vector<8x32xf32>
    %30 = arith.subf %24, %29 : vector<8x32xf32>
    %31 = arith.mulf %30, %30 : vector<8x32xf32>
    %cst_20 = arith.constant dense<0.000000e+00> : vector<8xf32>
    %32 = vector.multi_reduction <add>, %31, %cst_20 [1] : vector<8x32xf32> to vector<8xf32>
    %33 = vector.shape_cast %32 : vector<8xf32> to vector<8x1xf32>
    %cst_21 = arith.constant 3.200000e+01 : f32
    %34 = vector.broadcast %cst_21 : f32 to vector<8x1xf32>
    %35 = arith.divf %33, %34 : vector<8x1xf32>
    %36 = vector.broadcast %28 : vector<8x1xf32> to vector<8x32xf32>
    %37 = arith.subf %24, %36 : vector<8x32xf32>
    %cst_22 = arith.constant 9.99999974E-6 : f32
    %38 = vector.broadcast %cst_22 : f32 to vector<8x1xf32>
    %39 = arith.addf %35, %38 : vector<8x1xf32>
    %40 = math.rsqrt %39 : vector<8x1xf32>
    %41 = vector.broadcast %40 : vector<8x1xf32> to vector<8x32xf32>
    %42 = arith.mulf %37, %41 : vector<8x32xf32>
    %43 = vector.broadcast %2 : vector<1x32xf32> to vector<8x32xf32>
    %44 = arith.mulf %42, %43 : vector<8x32xf32>
    %45 = vector.broadcast %3 : vector<1x32xf32> to vector<8x32xf32>
    %46 = arith.addf %44, %45 : vector<8x32xf32>
    %c0_23 = arith.constant 0 : index
    %c0_24 = arith.constant 0 : index
    %47 = vector.load %arg8[%c0_23, %c0_24] : memref<32x64xf32, #tpu.memory_space<vmem>>, vector<32x64xf32>
    %cst_25 = arith.constant dense<0.000000e+00> : vector<8x64xf32>
    %48 = tpu.matmul %46, %47, %cst_25 {dimension_numbers = #tpu.dot_dimension_numbers<[1], [0], [0], [1], [0, 0, 1, 1], [], []>} : vector<8x32xf32>, vector<32x64xf32>, vector<8x64xf32> -> vector<8x64xf32>
    %49 = vector.broadcast %7 : vector<1x64xf32> to vector<8x64xf32>
    %50 = arith.addf %48, %49 : vector<8x64xf32>
    %cst_26 = arith.constant 0.000000e+00 : f32
    %51 = vector.broadcast %cst_26 : f32 to vector<8x64xf32>
    %52 = arith.maximumf %50, %51 : vector<8x64xf32>
    %c0_27 = arith.constant 0 : index
    %c0_28 = arith.constant 0 : index
    %53 = vector.load %arg9[%c0_27, %c0_28] : memref<64x32xf32, #tpu.memory_space<vmem>>, vector<64x32xf32>
    %cst_29 = arith.constant dense<0.000000e+00> : vector<8x32xf32>
    %54 = tpu.matmul %52, %53, %cst_29 {dimension_numbers = #tpu.dot_dimension_numbers<[1], [0], [0], [1], [0, 0, 1, 1], [], []>} : vector<8x64xf32>, vector<64x32xf32>, vector<8x32xf32> -> vector<8x32xf32>
    %55 = vector.broadcast %6 : vector<1x32xf32> to vector<8x32xf32>
    %56 = arith.addf %54, %55 : vector<8x32xf32>
    %57 = arith.addf %46, %56 : vector<8x32xf32>
    %cst_30 = arith.constant dense<0.000000e+00> : vector<8xf32>
    %58 = vector.multi_reduction <add>, %57, %cst_30 [1] : vector<8x32xf32> to vector<8xf32>
    %59 = vector.shape_cast %58 : vector<8xf32> to vector<8x1xf32>
    %cst_31 = arith.constant 3.200000e+01 : f32
    %60 = vector.broadcast %cst_31 : f32 to vector<8x1xf32>
    %61 = arith.divf %59, %60 : vector<8x1xf32>
    %62 = vector.broadcast %61 : vector<8x1xf32> to vector<8x32xf32>
    %63 = arith.subf %57, %62 : vector<8x32xf32>
    %64 = arith.mulf %63, %63 : vector<8x32xf32>
    %cst_32 = arith.constant dense<0.000000e+00> : vector<8xf32>
    %65 = vector.multi_reduction <add>, %64, %cst_32 [1] : vector<8x32xf32> to vector<8xf32>
    %66 = vector.shape_cast %65 : vector<8xf32> to vector<8x1xf32>
    %cst_33 = arith.constant 3.200000e+01 : f32
    %67 = vector.broadcast %cst_33 : f32 to vector<8x1xf32>
    %68 = arith.divf %66, %67 : vector<8x1xf32>
    %69 = vector.broadcast %61 : vector<8x1xf32> to vector<8x32xf32>
    %70 = arith.subf %57, %69 : vector<8x32xf32>
    %cst_34 = arith.constant 9.99999974E-6 : f32
    %71 = vector.broadcast %cst_34 : f32 to vector<8x1xf32>
    %72 = arith.addf %68, %71 : vector<8x1xf32>
    %73 = math.rsqrt %72 : vector<8x1xf32>
    %74 = vector.broadcast %73 : vector<8x1xf32> to vector<8x32xf32>
    %75 = arith.mulf %70, %74 : vector<8x32xf32>
    %76 = vector.broadcast %4 : vector<1x32xf32> to vector<8x32xf32>
    %77 = arith.mulf %75, %76 : vector<8x32xf32>
    %78 = vector.broadcast %5 : vector<1x32xf32> to vector<8x32xf32>
    %79 = arith.addf %77, %78 : vector<8x32xf32>
    %c0_35 = arith.constant 0 : index
    %c0_36 = arith.constant 0 : index
    %c0_37 = arith.constant 0 : index
    %80 = vector.load %arg12[%c0_35, %c0_36, %c0_37] : memref<1x8x32xf32, #tpu.memory_space<vmem>>, vector<1x8x32xf32>
    %81 = vector.shape_cast %80 : vector<1x8x32xf32> to vector<8x32xf32>
    %82 = vector.shape_cast %79 : vector<8x32xf32> to vector<1x8x32xf32>
    tpu.vector_store %arg12[%c0_35, %c0_36, %c0_37], %82 {strides = array<i32>} : memref<1x8x32xf32, #tpu.memory_space<vmem>>, vector<1x8x32xf32>,
    return
  }
  func.func @transform_0(%arg0: i32, %arg1: i32) -> (i32, i32, i32) {
    %c0_i32 = arith.constant 0 : i32
    %c0_i32_0 = arith.constant 0 : i32
    return %arg0, %arg1, %c0_i32 : i32, i32, i32
  }
  func.func @transform_1(%arg0: i32, %arg1: i32) -> (i32, i32, i32) {
    %c0_i32 = arith.constant 0 : i32
    %c0_i32_0 = arith.constant 0 : i32
    %c0_i32_1 = arith.constant 0 : i32
    return %arg0, %c0_i32, %c0_i32_0 : i32, i32, i32
  }
  func.func @transform_2(%arg0: i32, %arg1: i32) -> (i32, i32) {
    %c0_i32 = arith.constant 0 : i32
    %c0_i32_0 = arith.constant 0 : i32
    %c0_i32_1 = arith.constant 0 : i32
    return %c0_i32, %c0_i32_0 : i32, i32
  }
  func.func @transform_3(%arg0: i32, %arg1: i32) -> (i32, i32) {
    %c0_i32 = arith.constant 0 : i32
    %c0_i32_0 = arith.constant 0 : i32
    %c0_i32_1 = arith.constant 0 : i32
    return %c0_i32, %c0_i32_0 : i32, i32
  }
  func.func @transform_4(%arg0: i32, %arg1: i32) -> (i32, i32) {
    %c0_i32 = arith.constant 0 : i32
    %c0_i32_0 = arith.constant 0 : i32
    %c0_i32_1 = arith.constant 0 : i32
    return %c0_i32, %c0_i32_0 : i32, i32
  }
  func.func @transform_5(%arg0: i32, %arg1: i32) -> (i32, i32) {
    %c0_i32 = arith.constant 0 : i32
    %c0_i32_0 = arith.constant 0 : i32
    %c0_i32_1 = arith.constant 0 : i32
    return %c0_i32, %c0_i32_0 : i32, i32
  }
  func.func @transform_6(%arg0: i32, %arg1: i32) -> (i32, i32) {
    %c0_i32 = arith.constant 0 : i32
    %c0_i32_0 = arith.constant 0 : i32
    %c0_i32_1 = arith.constant 0 : i32
    return %c0_i32, %c0_i32_0 : i32, i32
  }
  func.func @transform_7(%arg0: i32, %arg1: i32) -> (i32, i32) {
    %c0_i32 = arith.constant 0 : i32
    %c0_i32_0 = arith.constant 0 : i32
    %c0_i32_1 = arith.constant 0 : i32
    return %c0_i32, %c0_i32_0 : i32, i32
  }
  func.func @transform_8(%arg0: i32, %arg1: i32) -> (i32, i32) {
    %c0_i32 = arith.constant 0 : i32
    %c0_i32_0 = arith.constant 0 : i32
    %c0_i32_1 = arith.constant 0 : i32
    return %c0_i32, %c0_i32_0 : i32, i32
  }
  func.func @transform_9(%arg0: i32, %arg1: i32) -> (i32, i32) {
    %c0_i32 = arith.constant 0 : i32
    %c0_i32_0 = arith.constant 0 : i32
    %c0_i32_1 = arith.constant 0 : i32
    return %c0_i32, %c0_i32_0 : i32, i32
  }
  func.func @transform_10(%arg0: i32, %arg1: i32) -> (i32, i32, i32) {
    %c0_i32 = arith.constant 0 : i32
    %c0_i32_0 = arith.constant 0 : i32
    return %arg0, %arg1, %c0_i32 : i32, i32, i32
  }
}

</mosaic_0001>

<llo_original>
// kernel: tpu_custom_call.1
$region0: #{tpu_custom_call.1}
  #allocation0 [shape = 'u32[]', space=smem, size = 0x4, offset = 0x4, fixed_abs, tag = 'smem constant byte address 0x4 - core index']
  #allocation1 [shape = 'u32[144,128]{1,0:T(1,128)}', space=vmem, size = 0x12000, scoped, tag = 'internal scratch']
  #allocation2 [shape = 'f32[8,32]{1,0:T(8,128)}', space=vmem, size = 0x1000, scoped, tag = 'scratch operand']
  #allocation3 [shape = 'f32[8,32]{1,0:T(8,128)}', space=vmem, size = 0x1000, scoped, tag = 'scratch operand']
  %s0 = inlined_call_operand.hbm [shape: f32[2,8,32], index: 0, kind: input, shape index: {}]
  %s1 = inlined_call_operand.hbm [shape: f32[2,8,32], index: 1, kind: input, shape index: {}]
  %s2 = inlined_call_operand.vmem [shape: f32[32,32], index: 2, kind: input, shape index: {}]
  %s3 = inlined_call_operand.vmem [shape: f32[32,32], index: 3, kind: input, shape index: {}]
  %s4 = inlined_call_operand.vmem [shape: f32[32,32], index: 4, kind: input, shape index: {}]
  %s5 = inlined_call_operand.hbm [shape: f32[32,32], index: 5, kind: input, shape index: {}]
  %s6 = inlined_call_operand.hbm [shape: f32[32,64], index: 6, kind: input, shape index: {}]
  %s7 = inlined_call_operand.vmem [shape: f32[64,32], index: 7, kind: input, shape index: {}]
  %s8 = inlined_call_operand.hbm [shape: f32[9,32], index: 8, kind: input, shape index: {}]
  %s9 = inlined_call_operand.vmem [shape: f32[1,64], index: 9, kind: input, shape index: {}]
  %s10 = inlined_call_operand.hbm [shape: f32[2,8,32], index: 10, kind: output, shape index: {}]
  %s11 = sld [smem:[#allocation0]]
  $region97: #{tpu_custom_call.1} parent=0
    _
  %s13 = ssub.s32 1, %s11
  %s14 = scalar_select 0, %s13, %s11
  $region1: #{tpu_custom_call.1} parent=0
    #allocation4 [shape = 'u8[8192]{0}', space=vmem, size = 0x2000, scoped, tag = 'input window, operand 0']
    #allocation5 [shape = 's32[2]{0}', space=sflag, size = 0x8, scoped, tag = 'scoped memory for tpu_custom_call.1']
    #allocation6 [shape = 's32[2]{0}', space=sflag, size = 0x8, scoped, tag = 'scoped memory for tpu_custom_call.1']
    #allocation7 [shape = 'u8[8192]{0}', space=vmem, size = 0x2000, scoped, tag = 'input window, operand 1']
    #allocation8 [shape = 's32[2]{0}', space=sflag, size = 0x8, scoped, tag = 'scoped memory for tpu_custom_call.1']
    #allocation9 [shape = 'u8[16384]{0}', space=vmem, size = 0x4000, scoped, tag = 'input window, operand 5, single buffered']
    #allocation10 [shape = 'u8[16384]{0}', space=vmem, size = 0x4000, scoped, tag = 'input window, operand 6, single buffered']
    #allocation11 [shape = 's32[1]{0}', space=sflag, size = 0x4, scoped, tag = 'scoped memory for tpu_custom_call.1']
    #allocation12 [shape = 'u8[8192]{0}', space=vmem, size = 0x2000, scoped, tag = 'input window, operand 8, single buffered']
    #allocation13 [shape = 'u8[8192]{0}', space=vmem, size = 0x2000, scoped, tag = 'output window, operand 0']
    %15 = vsyncpa [#allocation5], 0
    %s16 = scalar_lea.sflag [#allocation5], 1
    %17 = vsyncpa %s16, 0
    %18 = vsyncpa [#allocation8], 0
    %s19 = scalar_lea.sflag [#allocation8], 1
    %20 = vsyncpa %s19, 0
    %21 = vsyncpa [#allocation11], 0
    %22 = vsyncpa [#allocation6], 0
    %s23 = scalar_lea.sflag [#allocation6], 1
    %24 = vsyncpa %s23, 0
    loop: start=0, step=1, limit=4
    $region2: #{tpu_custom_call.1} parent=1 // loop_pre_header
      _
    $region3: #{tpu_custom_call.1} parent=1 // loop_header
      %s26 = sphi 0, %s30
      %p27 = scmp.ge.s32.totalorder %s26, 4
      %s33 = sphi 0, %s45
      %s34 = sphi 0, %s41
      %s35 = sphi 0, %s33
      %s36 = sphi 0, %s34
      %s37 = sphi 0, %s35
      %s38 = sphi 0, %s36
      %s50 = sphi 0, %s52
      %s53 = sphi 0, %s50
      %s54 = sphi 0, %s53
      %s70 = sphi 0, %s54
      %s76 = sphi 0, %s78
      %s79 = sphi 0, %s76
      %s80 = sphi 0, %s79
      %s96 = sphi 0, %s80
      %s100 = sphi 0, %s100
      %s102 = sphi 0, %s100
      %s103 = sphi 0, %s102
      %s117 = sphi 0, %s103
      %s121 = sphi 0, %s121
      %s123 = sphi 0, %s121
      %s124 = sphi 0, %s123
      %s138 = sphi 0, %s124
      %s142 = sphi 0, %s142
      %s144 = sphi 0, %s142
      %s145 = sphi 0, %s144
      %s159 = sphi 0, %s145
      %s163 = sphi 0, %s163
      %s165 = sphi 0, %s163
      %s166 = sphi 0, %s165
      %s180 = sphi 0, %s166
      %s184 = sphi 0, %s184
      %s186 = sphi 0, %s184
      %s187 = sphi 0, %s186
      %s201 = sphi 0, %s187
      %s205 = sphi 0, %s205
      %s207 = sphi 0, %s205
      %s208 = sphi 0, %s207
      %s222 = sphi 0, %s208
      %s226 = sphi 0, %s226
      %s228 = sphi 0, %s226
      %s229 = sphi 0, %s228
      %s243 = sphi 0, %s229
      %s247 = sphi 0, %s247
      %s249 = sphi 0, %s247
      %s250 = sphi 0, %s249
      %s264 = sphi 0, %s250
      %s272 = sphi 0, %s274
      %s275 = sphi 0, %s272
      %s276 = sphi 0, %s275
      %s292 = sphi 0, %s276
    $region4: #{tpu_custom_call.1} parent=1 // loop_header_branch
      %29 = sbr.rel (%p27) target = $region8
    $region5: #{tpu_custom_call.1} parent=1 // loop_body
      %s31 = ssub.s32 %s26, 1
      %s32 = ssub.s32 %s26, 2
      %s39 = sadd.s32 1, %s34
      %p40 = scmp.ge.s32.totalorder %s39, 1
      %s41 = scalar_select %p40, 0, %s39
      %s42 = sadd.s32 1, %s33
      %s43 = scalar_select %p40, %s42, %s33
      %p44 = scmp.ge.s32.totalorder %s43, 2
      %s45 = scalar_select %p44, 0, %s43
      %s46 = ssub.s32 %s33, %s45
      %s47 = ssub.s32 %s34, %s41
      %s48 = sor.u32 %s46, %s47
      %p49 = scmp.eq.s32.totalorder %s48, 0
      %s51 = sadd.s32 %s50, 1
      %s52 = scalar_select %p49, %s50, %s51
      %p55 = pneg %p49
      %p56 = scmp.eq.s32.totalorder %s26, 1
      %p57 = por %p55, %p56
      %p58 = scmp.ne.s32.totalorder %s50, %s53
      %p59 = scmp.eq.s32.totalorder %s26, 0
      %p60 = por %p58, %p59
      %p61 = scmp.ne.s32.totalorder %s50, %s53
      %p62 = scmp.eq.s32.totalorder %s31, 1
      %p63 = por %p61, %p62
      %p64 = scmp.ne.s32.totalorder %s53, %s54
      %p65 = scmp.eq.s32.totalorder %s31, 0
      %p66 = por %p64, %p65
      %p67 = scmp.ne.s32.totalorder %s53, %s54
      %p68 = scmp.eq.s32.totalorder %s32, 1
      %p69 = por %p67, %p68
      %p71 = scmp.ne.s32.totalorder %s54, %s70
      %p72 = scmp.eq.s32.totalorder %s32, 0
      %p73 = por %p71, %p72
      %s74 = ssub.s32 %s33, %s45
      %p75 = scmp.eq.s32.totalorder %s74, 0
      %s77 = sadd.s32 %s76, 1
      %s78 = scalar_select %p75, %s76, %s77
      %p81 = pneg %p75
      %p82 = scmp.eq.s32.totalorder %s26, 1
      %p83 = por %p81, %p82
      %p84 = scmp.ne.s32.totalorder %s76, %s79
      %p85 = scmp.eq.s32.totalorder %s26, 0
      %p86 = por %p84, %p85
      %p87 = scmp.ne.s32.totalorder %s76, %s79
      %p88 = scmp.eq.s32.totalorder %s31, 1
      %p89 = por %p87, %p88
      %p90 = scmp.ne.s32.totalorder %s79, %s80
      %p91 = scmp.eq.s32.totalorder %s31, 0
      %p92 = por %p90, %p91
      %p93 = scmp.ne.s32.totalorder %s79, %s80
      %p94 = scmp.eq.s32.totalorder %s32, 1
      %p95 = por %p93, %p94
      %p97 = scmp.ne.s32.totalorder %s80, %s96
      %p98 = scmp.eq.s32.totalorder %s32, 0
      %p99 = por %p97, %p98
      %s101 = sadd.s32 %s100, 1
      %p104 = scmp.eq.s32.totalorder %s26, 1
      %p105 = scmp.ne.s32.totalorder %s100, %s102
      %p106 = scmp.eq.s32.totalorder %s26, 0
      %p107 = por %p105, %p106
      %p108 = scmp.ne.s32.totalorder %s100, %s102
      %p109 = scmp.eq.s32.totalorder %s31, 1
      %p110 = por %p108, %p109
      %p111 = scmp.ne.s32.totalorder %s102, %s103
      %p112 = scmp.eq.s32.totalorder %s31, 0
      %p113 = por %p111, %p112
      %p114 = scmp.ne.s32.totalorder %s102, %s103
      %p115 = scmp.eq.s32.totalorder %s32, 1
      %p116 = por %p114, %p115
      %p118 = scmp.ne.s32.totalorder %s103, %s117
      %p119 = scmp.eq.s32.totalorder %s32, 0
      %p120 = por %p118, %p119
      %s122 = sadd.s32 %s121, 1
      %p125 = scmp.eq.s32.totalorder %s26, 1
      %p126 = scmp.ne.s32.totalorder %s121, %s123
      %p127 = scmp.eq.s32.totalorder %s26, 0
      %p128 = por %p126, %p127
      %p129 = scmp.ne.s32.totalorder %s121, %s123
      %p130 = scmp.eq.s32.totalorder %s31, 1
      %p131 = por %p129, %p130
      %p132 = scmp.ne.s32.totalorder %s123, %s124
      %p133 = scmp.eq.s32.totalorder %s31, 0
      %p134 = por %p132, %p133
      %p135 = scmp.ne.s32.totalorder %s123, %s124
      %p136 = scmp.eq.s32.totalorder %s32, 1
      %p137 = por %p135, %p136
      %p139 = scmp.ne.s32.totalorder %s124, %s138
      %p140 = scmp.eq.s32.totalorder %s32, 0
      %p141 = por %p139, %p140
      %s143 = sadd.s32 %s142, 1
      %p146 = scmp.eq.s32.totalorder %s26, 1
      %p147 = scmp.ne.s32.totalorder %s142, %s144
      %p148 = scmp.eq.s32.totalorder %s26, 0
      %p149 = por %p147, %p148
      %p150 = scmp.ne.s32.totalorder %s142, %s144
      %p151 = scmp.eq.s32.totalorder %s31, 1
      %p152 = por %p150, %p151
      %p153 = scmp.ne.s32.totalorder %s144, %s145
      %p154 = scmp.eq.s32.totalorder %s31, 0
      %p155 = por %p153, %p154
      %p156 = scmp.ne.s32.totalorder %s144, %s145
      %p157 = scmp.eq.s32.totalorder %s32, 1
      %p158 = por %p156, %p157
      %p160 = scmp.ne.s32.totalorder %s145, %s159
      %p161 = scmp.eq.s32.totalorder %s32, 0
      %p162 = por %p160, %p161
      %s164 = sadd.s32 %s163, 1
      %p167 = scmp.eq.s32.totalorder %s26, 1
      %p168 = scmp.ne.s32.totalorder %s163, %s165
      %p169 = scmp.eq.s32.totalorder %s26, 0
      %p170 = por %p168, %p169
      %p171 = scmp.ne.s32.totalorder %s163, %s165
      %p172 = scmp.eq.s32.totalorder %s31, 1
      %p173 = por %p171, %p172
      %p174 = scmp.ne.s32.totalorder %s165, %s166
      %p175 = scmp.eq.s32.totalorder %s31, 0
      %p176 = por %p174, %p175
      %p177 = scmp.ne.s32.totalorder %s165, %s166
      %p178 = scmp.eq.s32.totalorder %s32, 1
      %p179 = por %p177, %p178
      %p181 = scmp.ne.s32.totalorder %s166, %s180
      %p182 = scmp.eq.s32.totalorder %s32, 0
      %p183 = por %p181, %p182
      %s185 = sadd.s32 %s184, 1
      %p188 = scmp.eq.s32.totalorder %s26, 1
      %p189 = scmp.ne.s32.totalorder %s184, %s186
      %p190 = scmp.eq.s32.totalorder %s26, 0
      %p191 = por %p189, %p190
      %p192 = scmp.ne.s32.totalorder %s184, %s186
      %p193 = scmp.eq.s32.totalorder %s31, 1
      %p194 = por %p192, %p193
      %p195 = scmp.ne.s32.totalorder %s186, %s187
      %p196 = scmp.eq.s32.totalorder %s31, 0
      %p197 = por %p195, %p196
      %p198 = scmp.ne.s32.totalorder %s186, %s187
      %p199 = scmp.eq.s32.totalorder %s32, 1
      %p200 = por %p198, %p199
      %p202 = scmp.ne.s32.totalorder %s187, %s201
      %p203 = scmp.eq.s32.totalorder %s32, 0
      %p204 = por %p202, %p203
      %s206 = sadd.s32 %s205, 1
      %p209 = scmp.eq.s32.totalorder %s26, 1
      %p210 = scmp.ne.s32.totalorder %s205, %s207
      %p211 = scmp.eq.s32.totalorder %s26, 0
      %p212 = por %p210, %p211
      %p213 = scmp.ne.s32.totalorder %s205, %s207
      %p214 = scmp.eq.s32.totalorder %s31, 1
      %p215 = por %p213, %p214
      %p216 = scmp.ne.s32.totalorder %s207, %s208
      %p217 = scmp.eq.s32.totalorder %s31, 0
      %p218 = por %p216, %p217
      %p219 = scmp.ne.s32.totalorder %s207, %s208
      %p220 = scmp.eq.s32.totalorder %s32, 1
      %p221 = por %p219, %p220
      %p223 = scmp.ne.s32.totalorder %s208, %s222
      %p224 = scmp.eq.s32.totalorder %s32, 0
      %p225 = por %p223, %p224
      %s227 = sadd.s32 %s226, 1
      %p230 = scmp.eq.s32.totalorder %s26, 1
      %p231 = scmp.ne.s32.totalorder %s226, %s228
      %p232 = scmp.eq.s32.totalorder %s26, 0
      %p233 = por %p231, %p232
      %p234 = scmp.ne.s32.totalorder %s226, %s228
      %p235 = scmp.eq.s32.totalorder %s31, 1
      %p236 = por %p234, %p235
      %p237 = scmp.ne.s32.totalorder %s228, %s229
      %p238 = scmp.eq.s32.totalorder %s31, 0
      %p239 = por %p237, %p238
      %p240 = scmp.ne.s32.totalorder %s228, %s229
      %p241 = scmp.eq.s32.totalorder %s32, 1
      %p242 = por %p240, %p241
      %p244 = scmp.ne.s32.totalorder %s229, %s243
      %p245 = scmp.eq.s32.totalorder %s32, 0
      %p246 = por %p244, %p245
      %s248 = sadd.s32 %s247, 1
      %p251 = scmp.eq.s32.totalorder %s26, 1
      %p252 = scmp.ne.s32.totalorder %s247, %s249
      %p253 = scmp.eq.s32.totalorder %s26, 0
      %p254 = por %p252, %p253
      %p255 = scmp.ne.s32.totalorder %s247, %s249
      %p256 = scmp.eq.s32.totalorder %s31, 1
      %p257 = por %p255, %p256
      %p258 = scmp.ne.s32.totalorder %s249, %s250
      %p259 = scmp.eq.s32.totalorder %s31, 0
      %p260 = por %p258, %p259
      %p261 = scmp.ne.s32.totalorder %s249, %s250
      %p262 = scmp.eq.s32.totalorder %s32, 1
      %p263 = por %p261, %p262
      %p265 = scmp.ne.s32.totalorder %s250, %s264
      %p266 = scmp.eq.s32.totalorder %s32, 0
      %p267 = por %p265, %p266
      %s268 = ssub.s32 %s33, %s45
      %s269 = ssub.s32 %s34, %s41
      %s270 = sor.u32 %s268, %s269
      %p271 = scmp.eq.s32.totalorder %s270, 0
      %s273 = sadd.s32 %s272, 1
      %s274 = scalar_select %p271, %s272, %s273
      %p277 = pneg %p271
      %p278 = scmp.eq.s32.totalorder %s26, 1
      %p279 = por %p277, %p278
      %p280 = scmp.ne.s32.totalorder %s272, %s275
      %p281 = scmp.eq.s32.totalorder %s26, 0
      %p282 = por %p280, %p281
      %p283 = scmp.ne.s32.totalorder %s272, %s275
      %p284 = scmp.eq.s32.totalorder %s31, 1
      %p285 = por %p283, %p284
      %p286 = scmp.ne.s32.totalorder %s275, %s276
      %p287 = scmp.eq.s32.totalorder %s31, 0
      %p288 = por %p286, %p287
      %p289 = scmp.ne.s32.totalorder %s275, %s276
      %p290 = scmp.eq.s32.totalorder %s32, 1
      %p291 = por %p289, %p290
      %p293 = scmp.ne.s32.totalorder %s276, %s292
      %p294 = scmp.eq.s32.totalorder %s32, 0
      %p295 = por %p293, %p294
      %p296 = scmp.le.s32.totalorder 1, %s26
      %p297 = scmp.lt.s32.totalorder %s26, 3
      %p298 = pnand %p296, %p297
      %p299 = pneg %p298
      // Predicated region
      $region9: #{tpu_custom_call.1} parent=5 // pred_check
        _
      $region10: #{tpu_custom_call.1} parent=5 // pred_check_branch
        %301 = sbr.rel (%p298) target = $region12
      $region11: #{tpu_custom_call.1} parent=5 // pred_region
        %s302 = ssub.s32 %s26, 1
        // Predicated region
        $region13: #{tpu_custom_call.1} parent=11 // pred_check
          %p303 = pneg %p113
        $region14: #{tpu_custom_call.1} parent=11 // pred_check_branch
          %305 = sbr.rel (%p303) target = $region16
        $region15: #{tpu_custom_call.1} parent=11 // pred_region
          _
        $region16: #{tpu_custom_call.1} parent=11 // pred_fallthru
          _
        // Predicated region
        $region17: #{tpu_custom_call.1} parent=11 // pred_check
          %p306 = pneg %p134
        $region18: #{tpu_custom_call.1} parent=11 // pred_check_branch
          %308 = sbr.rel (%p306) target = $region20
        $region19: #{tpu_custom_call.1} parent=11 // pred_region
          _
        $region20: #{tpu_custom_call.1} parent=11 // pred_fallthru
          _
        // Predicated region
        $region21: #{tpu_custom_call.1} parent=11 // pred_check
          %p309 = pneg %p155
        $region22: #{tpu_custom_call.1} parent=11 // pred_check_branch
          %311 = sbr.rel (%p309) target = $region24
        $region23: #{tpu_custom_call.1} parent=11 // pred_region
          _
        $region24: #{tpu_custom_call.1} parent=11 // pred_fallthru
          _
        // Predicated region
        $region25: #{tpu_custom_call.1} parent=11 // pred_check
          %p312 = pneg %p176
        $region26: #{tpu_custom_call.1} parent=11 // pred_check_branch
          %314 = sbr.rel (%p312) target = $region28
        $region27: #{tpu_custom_call.1} parent=11 // pred_region
          %s316 = ssub.s32 512, 512
          %317 = vsyncadd [#allocation8], %s316
          %s318 = sshll.u32 [#allocation9], 4
          %s319 = int_to_ptr.vmem [resolvable:$true] %s318
          %324 = dma.hbm_to_vmem [thread:$0]  %s5, 512, %s319, [#allocation8], 128, 128, 8
        $region28: #{tpu_custom_call.1} parent=11 // pred_fallthru
          _
        // Predicated region
        $region29: #{tpu_custom_call.1} parent=11 // pred_check
          %p325 = pneg %p197
        $region30: #{tpu_custom_call.1} parent=11 // pred_check_branch
          %327 = sbr.rel (%p325) target = $region32
        $region31: #{tpu_custom_call.1} parent=11 // pred_region
          %s329 = ssub.s32 512, 512
          %330 = vsyncadd [#allocation11], %s329
          %s331 = sshll.u32 [#allocation10], 4
          %s332 = int_to_ptr.vmem [resolvable:$true] %s331
          %337 = dma.hbm_to_vmem [thread:$0]  %s6, 512, %s332, [#allocation11], 128, 128, 8
        $region32: #{tpu_custom_call.1} parent=11 // pred_fallthru
          _
        // Predicated region
        $region33: #{tpu_custom_call.1} parent=11 // pred_check
          %p338 = pneg %p218
        $region34: #{tpu_custom_call.1} parent=11 // pred_check_branch
          %340 = sbr.rel (%p338) target = $region36
        $region35: #{tpu_custom_call.1} parent=11 // pred_region
          _
        $region36: #{tpu_custom_call.1} parent=11 // pred_fallthru
          _
        // Predicated region
        $region37: #{tpu_custom_call.1} parent=11 // pred_check
          %p341 = pneg %p239
        $region38: #{tpu_custom_call.1} parent=11 // pred_check_branch
          %343 = sbr.rel (%p341) target = $region40
        $region39: #{tpu_custom_call.1} parent=11 // pred_region
          %s345 = ssub.s32 256, 256
          %346 = vsyncadd [#allocation11], %s345
          %s347 = sshll.u32 [#allocation12], 4
          %s348 = int_to_ptr.vmem [resolvable:$true] %s347
          %353 = dma.hbm_to_vmem [thread:$0]  %s8, 256, %s348, [#allocation11], 128, 128, 8
        $region40: #{tpu_custom_call.1} parent=11 // pred_fallthru
          _
        // Predicated region
        $region41: #{tpu_custom_call.1} parent=11 // pred_check
          %p354 = pneg %p260
        $region42: #{tpu_custom_call.1} parent=11 // pred_check_branch
          %356 = sbr.rel (%p354) target = $region44
        $region43: #{tpu_custom_call.1} parent=11 // pred_region
          _
        $region44: #{tpu_custom_call.1} parent=11 // pred_fallthru
          _
      $region12: #{tpu_custom_call.1} parent=5 // pred_fallthru
        _
      %p357 = scmp.lt.s32.totalorder %s26, 2
      // Predicated region
      $region45: #{tpu_custom_call.1} parent=5 // pred_check
        %p358 = pneg %p357
      $region46: #{tpu_custom_call.1} parent=5 // pred_check_branch
        %360 = sbr.rel (%p358) target = $region48
      $region47: #{tpu_custom_call.1} parent=5 // pred_region
        // Predicated region
        $region49: #{tpu_custom_call.1} parent=47 // pred_check
          %p361 = pneg %p60
        $region50: #{tpu_custom_call.1} parent=47 // pred_check_branch
          %363 = sbr.rel (%p361) target = $region52
        $region51: #{tpu_custom_call.1} parent=47 // pred_region
          %s364 = sand.u32 %s50, 1
          %s365 = scalar_lea.sflag [#allocation5], %s364
          %s366 = sand.u32 %s50, 1
          %s367 = smul.addr %s366, 8
          %s368 = scalar_lea.vmem [#allocation4], %s367
          %s370 = ssub.s32 128, 128
          %371 = vsyncadd %s365, %s370
          %s372 = sadd.s32 %s34, %s33
          %s373 = smul.addr %s372, 128
          %s374 = scalar_lea.hbm %s0, %s373
          %s376 = sshll.u32 %s368, 4
          %s377 = int_to_ptr.vmem [resolvable:$true] %s376
          %379 = dma.hbm_to_vmem [thread:$0]  %s374, 128, %s377, %s365
        $region52: #{tpu_custom_call.1} parent=47 // pred_fallthru
          _
        // Predicated region
        $region53: #{tpu_custom_call.1} parent=47 // pred_check
          %p380 = pneg %p86
        $region54: #{tpu_custom_call.1} parent=47 // pred_check_branch
          %382 = sbr.rel (%p380) target = $region56
        $region55: #{tpu_custom_call.1} parent=47 // pred_region
          %s383 = sand.u32 %s26, 1
          %s384 = scalar_lea.sflag [#allocation8], %s383
          %s385 = sand.u32 %s76, 1
          %s386 = smul.addr %s385, 8
          %s387 = scalar_lea.vmem [#allocation7], %s386
          %s389 = ssub.s32 128, 128
          %390 = vsyncadd %s384, %s389
          %s391 = smul.addr %s33, 128
          %s392 = scalar_lea.hbm %s1, %s391
          %s394 = sshll.u32 %s387, 4
          %s395 = int_to_ptr.vmem [resolvable:$true] %s394
          %397 = dma.hbm_to_vmem [thread:$0]  %s392, 128, %s395, %s384
        $region56: #{tpu_custom_call.1} parent=47 // pred_fallthru
          _
      $region48: #{tpu_custom_call.1} parent=5 // pred_fallthru
        _
      %p398 = scmp.le.s32.totalorder 1, %s26
      %p399 = scmp.lt.s32.totalorder %s26, 3
      %p400 = pnand %p398, %p399
      %p401 = pneg %p400
      // Predicated region
      $region57: #{tpu_custom_call.1} parent=5 // pred_check
        _
      $region58: #{tpu_custom_call.1} parent=5 // pred_check_branch
        %403 = sbr.rel (%p400) target = $region60
      $region59: #{tpu_custom_call.1} parent=5 // pred_region
        %s404 = ssub.s32 %s26, 1
        %s405 = sand.u32 %s53, 1
        %s406 = scalar_lea.sflag [#allocation5], %s405
        %s407 = sand.u32 %s53, 1
        %s408 = smul.addr %s407, 8
        %s409 = scalar_lea.vmem [#allocation4], %s408
        // Predicated region
        $region61: #{tpu_custom_call.1} parent=59 // pred_check
          %p410 = pneg %p66
        $region62: #{tpu_custom_call.1} parent=59 // pred_check_branch
          %412 = sbr.rel (%p410) target = $region64
        $region63: #{tpu_custom_call.1} parent=59 // pred_region
          %413 = dma.done %s406, 128
        $region64: #{tpu_custom_call.1} parent=59 // pred_fallthru
          _
        %s414 = sand.u32 %s31, 1
        %s415 = scalar_lea.sflag [#allocation8], %s414
        %s416 = sand.u32 %s79, 1
        %s417 = smul.addr %s416, 8
        %s418 = scalar_lea.vmem [#allocation7], %s417
        // Predicated region
        $region65: #{tpu_custom_call.1} parent=59 // pred_check
          %p419 = pneg %p92
        $region66: #{tpu_custom_call.1} parent=59 // pred_check_branch
          %421 = sbr.rel (%p419) target = $region68
        $region67: #{tpu_custom_call.1} parent=59 // pred_region
          %422 = dma.done %s415, 128
        $region68: #{tpu_custom_call.1} parent=59 // pred_fallthru
          _
        // Predicated region
        $region69: #{tpu_custom_call.1} parent=59 // pred_check
          %p423 = pneg %p176
        $region70: #{tpu_custom_call.1} parent=59 // pred_check_branch
          %425 = sbr.rel (%p423) target = $region72
        $region71: #{tpu_custom_call.1} parent=59 // pred_region
          %426 = dma.done [#allocation8], 512
        $region72: #{tpu_custom_call.1} parent=59 // pred_fallthru
          _
        // Predicated region
        $region73: #{tpu_custom_call.1} parent=59 // pred_check
          %p427 = pneg %p197
        $region74: #{tpu_custom_call.1} parent=59 // pred_check_branch
          %429 = sbr.rel (%p427) target = $region76
        $region75: #{tpu_custom_call.1} parent=59 // pred_region
          %430 = dma.done [#allocation11], 512
        $region76: #{tpu_custom_call.1} parent=59 // pred_fallthru
          _
        // Predicated region
        $region77: #{tpu_custom_call.1} parent=59 // pred_check
          %p431 = pneg %p239
        $region78: #{tpu_custom_call.1} parent=59 // pred_check_branch
          %433 = sbr.rel (%p431) target = $region80
        $region79: #{tpu_custom_call.1} parent=59 // pred_region
          %434 = dma.done [#allocation11], 256
        $region80: #{tpu_custom_call.1} parent=59 // pred_fallthru
          _
        %s435 = sand.u32 %s53, 1
        %s436 = scalar_lea.sflag [#allocation5], %s435
        %s437 = sand.u32 %s53, 1
        %s438 = smul.addr %s437, 8
        %s439 = scalar_lea.vmem [#allocation4], %s438
        %p440 = pneg %p66
        %p441 = pneg %p63
        %s442 = sand.u32 %s31, 1
        %s443 = scalar_lea.sflag [#allocation8], %s442
        %s444 = sand.u32 %s79, 1
        %s445 = smul.addr %s444, 8
        %s446 = scalar_lea.vmem [#allocation7], %s445
        %p447 = pneg %p92
        %p448 = pneg %p89
        %p449 = pneg %p113
        %p450 = pneg %p110
        %p451 = pneg %p134
        %p452 = pneg %p131
        %p453 = pneg %p155
        %p454 = pneg %p152
        %p455 = pneg %p176
        %p456 = pneg %p173
        %p457 = pneg %p197
        %p458 = pneg %p194
        %p459 = pneg %p218
        %p460 = pneg %p215
        %p461 = pneg %p239
        %p462 = pneg %p236
        %p463 = pneg %p260
        %p464 = pneg %p257
        %p465 = pneg %p288
        %p466 = pneg %p285
        %s467 = sand.u32 %s275, 1
        %s468 = scalar_lea.sflag [#allocation6], %s467
        %s469 = sand.u32 %s275, 1
        %s470 = smul.addr %s469, 8
        %s471 = scalar_lea.vmem [#allocation13], %s470
        %v472 = vld [vmem:[#allocation12 + $0x2] sm:$0x1]
        %v473 = vld [vmem:[#allocation12 + $0x3] sm:$0x1]
        %v474 = vld [vmem:[#allocation12 + $0x4] sm:$0x1]
        %v475 = vld [vmem:[#allocation12 + $0x5] sm:$0x1]
        %v476 = vld [vmem:[#allocation12 + $0x6] sm:$0x1]
        %v477 = vld [vmem:[#allocation12 + $0x7] sm:$0x1]
        %v478 = vld [vmem:[#allocation12 + $0x8] sm:$0x1]
        %v479 = vld [vmem:[%s9] sm:$0x1]
        %p480 = scmp.eq.s32.totalorder %s36, 0
        // Predicated region
        $region81: #{tpu_custom_call.1} parent=59 // pred_check
          %p481 = pneg %p480
        $region82: #{tpu_custom_call.1} parent=59 // pred_check_branch
          %483 = sbr.rel (%p481) target = $region84
        $region83: #{tpu_custom_call.1} parent=59 // pred_region
          %v484 = vld [vmem:[%s418] sm:$0xff]
          %v485 = vld [vmem:[%s4] sm:$0xff]
          %v486 = vld [vmem:[%s4 + $0x8] sm:$0xff]
          %v487 = vld [vmem:[%s4 + $0x10] sm:$0xff]
          %v488 = vld [vmem:[%s4 + $0x18] sm:$0xff]
          %v489 = vlaneseq
          %v490 = vshrl.u32 %v489, 7
          %v491 = vsub.s32 0, %v490
          %v492 = vrot.slane %v472, %v491
          %vm493 = vcmask 261120
          %v495 = vsel %vm493, %v484, 0
          %497 = vmatprep.subr.mxu0 0.0
          %498 = vmatpush1.msra.mxu0 0.0
          %499 = vmatprep.subr.mxu0 0.0
          %500 = vmatpush1.msra.mxu0 0.0
          %501 = vmatprep.subr.mxu0 0.0
          %502 = vmatpush1.msra.mxu0 0.0
          %503 = vmatprep.subr.mxu0 0.0
          %504 = vmatpush1.msra.mxu0 0.0
          %505 = vmatprep.subr.mxu0 0.0
          %506 = vmatpush1.msra.mxu0 0.0
          %507 = vmatprep.subr.mxu0 0.0
          %508 = vmatpush1.msra.mxu0 0.0
          %509 = vmatprep.subr.mxu0 0.0
          %510 = vmatpush1.msra.mxu0 0.0
          %511 = vmatprep.subr.mxu0 0.0
          %512 = vmatpush1.msra.mxu0 0.0
          %513 = vmatprep.subr.mxu0 0.0
          %514 = vmatpush1.msra.mxu0 0.0
          %515 = vmatprep.subr.mxu0 0.0
          %516 = vmatpush1.msra.mxu0 0.0
          %517 = vmatprep.subr.mxu0 0.0
          %518 = vmatpush1.msra.mxu0 0.0
          %519 = vmatprep.subr.mxu0 0.0
          %520 = vmatpush1.msra.mxu0 0.0
          %521 = vmatprep.subr.mxu0 0.0
          %522 = vmatpush1.msra.mxu0 %v488
          %523 = vmatprep.subr.mxu0 0.0
          %524 = vmatpush1.msra.mxu0 %v487
          %525 = vmatprep.subr.mxu0 0.0
          %526 = vmatpush1.msra.mxu0 %v486
          %527 = vmatprep.subr.mxu0 0.0
          %528 = vmatpush1.msra.mxu0 %v485
          %529 = vmatprep.subr.mxu0 0.0
          %530 = vmatpush2.msra.mxu0 0.0
          %531 = vmatprep.subr.mxu0 0.0
          %532 = vmatpush2.msra.mxu0 0.0
          %533 = vmatprep.subr.mxu0 0.0
          %534 = vmatpush2.msra.mxu0 0.0
          %535 = vmatprep.subr.mxu0 0.0
          %536 = vmatpush2.msra.mxu0 0.0
          %537 = vmatprep.subr.mxu0 0.0
          %538 = vmatpush2.msra.mxu0 0.0
          %539 = vmatprep.subr.mxu0 0.0
          %540 = vmatpush2.msra.mxu0 0.0
          %541 = vmatprep.subr.mxu0 0.0
          %542 = vmatpush2.msra.mxu0 0.0
          %543 = vmatprep.subr.mxu0 0.0
          %544 = vmatpush2.msra.mxu0 0.0
          %545 = vmatprep.subr.mxu0 0.0
          %546 = vmatpush2.msra.mxu0 0.0
          %547 = vmatprep.subr.mxu0 0.0
          %548 = vmatpush2.msra.mxu0 0.0
          %549 = vmatprep.subr.mxu0 0.0
          %550 = vmatpush2.msra.mxu0 0.0
          %551 = vmatprep.subr.mxu0 0.0
          %552 = vmatpush2.msra.mxu0 0.0
          %553 = vmatprep.subr.mxu0 0.0
          %554 = vmatpush2.msra.mxu0 0.0
          %555 = vmatprep.subr.mxu0 0.0
          %556 = vmatpush2.msra.mxu0 0.0
          %557 = vmatprep.subr.mxu0 0.0
          %558 = vmatpush2.msra.mxu0 0.0
          %559 = vmatprep.subr.mxu0 0.0
          %560 = vmatpush2.msra.mxu0 0.0
          %561 = vmatprep.mubr.f32.mxu0 0.0
          %562 = vmatmul.mubr.f32.gmra.mxu0 %v495
          %v563 = vpop.f32.mrf.mxu0
          %v564 = vadd.f32 %v492, %v563
          %v565 = vpop.f32.mrf.mxu0
          %566 = vdwg.mxu0
          %567 = vst.msk [vmem:[#allocation3] sm:$0xff] %vm493, %v564
        $region84: #{tpu_custom_call.1} parent=59 // pred_fallthru
          _
        %v568 = vld [vmem:[%s409] sm:$0xff]
        %v569 = vld [vmem:[#allocation3] sm:$0xff]
        %vm570 = vcmask 261120
        %v571 = vsel %vm570, %v569, 0.0
        %v572 = vrot.slane %v571, 4
        %v573 = vadd.f32 %v571, %v572
        %v574 = vrot.slane %v573, 2
        %v575 = vadd.f32 %v573, %v574
        %v576 = vrot.slane %v575, 1
        %v577 = vadd.f32 %v575, %v576
        %v578 = vrcp.pop 8.0
        %v579 = vmul.f32 %v577, %v578
        %v580 = vld [vmem:[#allocation9] sm:$0xff]
        %v581 = vld [vmem:[#allocation9 + $0x8] sm:$0xff]
        %v582 = vld [vmem:[#allocation9 + $0x10] sm:$0xff]
        %v583 = vld [vmem:[#allocation9 + $0x18] sm:$0xff]
        %v584 = vlaneseq
        %v585 = vshrl.u32 %v584, 7
        %v586 = vsub.s32 0, %v585
        %v587 = vrot.slane %v473, %v586
        %v589 = vsel %vm570, %v579, 0
        %591 = vmatprep.subr.mxu0 0.0
        %592 = vmatpush1.msra.mxu0 0.0
        %593 = vmatprep.subr.mxu0 0.0
        %594 = vmatpush1.msra.mxu0 0.0
        %595 = vmatprep.subr.mxu0 0.0
        %596 = vmatpush1.msra.mxu0 0.0
        %597 = vmatprep.subr.mxu0 0.0
        %598 = vmatpush1.msra.mxu0 0.0
        %599 = vmatprep.subr.mxu0 0.0
        %600 = vmatpush1.msra.mxu0 0.0
        %601 = vmatprep.subr.mxu0 0.0
        %602 = vmatpush1.msra.mxu0 0.0
        %603 = vmatprep.subr.mxu0 0.0
        %604 = vmatpush1.msra.mxu0 0.0
        %605 = vmatprep.subr.mxu0 0.0
        %606 = vmatpush1.msra.mxu0 0.0
        %607 = vmatprep.subr.mxu0 0.0
        %608 = vmatpush1.msra.mxu0 0.0
        %609 = vmatprep.subr.mxu0 0.0
        %610 = vmatpush1.msra.mxu0 0.0
        %611 = vmatprep.subr.mxu0 0.0
        %612 = vmatpush1.msra.mxu0 0.0
        %613 = vmatprep.subr.mxu0 0.0
        %614 = vmatpush1.msra.mxu0 0.0
        %615 = vmatprep.subr.mxu0 0.0
        %616 = vmatpush1.msra.mxu0 %v583
        %617 = vmatprep.subr.mxu0 0.0
        %618 = vmatpush1.msra.mxu0 %v582
        %619 = vmatprep.subr.mxu0 0.0
        %620 = vmatpush1.msra.mxu0 %v581
        %621 = vmatprep.subr.mxu0 0.0
        %622 = vmatpush1.msra.mxu0 %v580
        %623 = vmatprep.subr.mxu0 0.0
        %624 = vmatpush2.msra.mxu0 0.0
        %625 = vmatprep.subr.mxu0 0.0
        %626 = vmatpush2.msra.mxu0 0.0
        %627 = vmatprep.subr.mxu0 0.0
        %628 = vmatpush2.msra.mxu0 0.0
        %629 = vmatprep.subr.mxu0 0.0
        %630 = vmatpush2.msra.mxu0 0.0
        %631 = vmatprep.subr.mxu0 0.0
        %632 = vmatpush2.msra.mxu0 0.0
        %633 = vmatprep.subr.mxu0 0.0
        %634 = vmatpush2.msra.mxu0 0.0
        %635 = vmatprep.subr.mxu0 0.0
        %636 = vmatpush2.msra.mxu0 0.0
        %637 = vmatprep.subr.mxu0 0.0
        %638 = vmatpush2.msra.mxu0 0.0
        %639 = vmatprep.subr.mxu0 0.0
        %640 = vmatpush2.msra.mxu0 0.0
        %641 = vmatprep.subr.mxu0 0.0
        %642 = vmatpush2.msra.mxu0 0.0
        %643 = vmatprep.subr.mxu0 0.0
        %644 = vmatpush2.msra.mxu0 0.0
        %645 = vmatprep.subr.mxu0 0.0
        %646 = vmatpush2.msra.mxu0 0.0
        %647 = vmatprep.subr.mxu0 0.0
        %648 = vmatpush2.msra.mxu0 0.0
        %649 = vmatprep.subr.mxu0 0.0
        %650 = vmatpush2.msra.mxu0 0.0
        %651 = vmatprep.subr.mxu0 0.0
        %652 = vmatpush2.msra.mxu0 0.0
        %653 = vmatprep.subr.mxu0 0.0
        %654 = vmatpush2.msra.mxu0 0.0
        %655 = vmatprep.mubr.f32.mxu0 0.0
        %656 = vmatmul.mubr.f32.gmra.mxu0 %v589
        %v657 = vpop.f32.mrf.mxu0
        %v658 = vadd.f32 %v587, %v657
        %v659 = vpop.f32.mrf.mxu0
        %660 = vdwg.mxu0
        %v661 = vadd.f32 %v568, %v658
        %v662 = vsel %vm570, %v661, 0.0
        %663 = vadd.xlane.f32.xlu0 %v662
        %v664 = vpop.xlane.xlu0 %663
        %v665 = vrcp.pop 32.0
        %v666 = vmul.f32 %v664, %v665
        %v667 = vsub.f32 %v661, %v666
        %v668 = vmul.f32 %v667, %v667
        %v669 = vsel %vm570, %v668, 0.0
        %670 = vadd.xlane.f32.xlu0 %v669
        %v671 = vpop.xlane.xlu0 %670
        %v672 = vmul.f32 %v671, %v665
        %v673 = vadd.f32 %v672, 1e-05
        %v674 = vrsqrt.pop %v673
        %v675 = vmul.f32 %v667, %v674
        %v676 = vlaneseq
        %v677 = vshrl.u32 %v676, 7
        %v678 = vsub.s32 0, %v677
        %v679 = vrot.slane %v474, %v678
        %v680 = vmul.f32 %v675, %v679
        %v681 = vlaneseq
        %v682 = vshrl.u32 %v681, 7
        %v683 = vsub.s32 0, %v682
        %v684 = vrot.slane %v475, %v683
        %v685 = vadd.f32 %v680, %v684
        %v686 = vld [vmem:[#allocation10] sm:$0xff]
        %v687 = vld [vmem:[#allocation10 + $0x8] sm:$0xff]
        %v688 = vld [vmem:[#allocation10 + $0x10] sm:$0xff]
        %v689 = vld [vmem:[#allocation10 + $0x18] sm:$0xff]
        %v691 = vlaneseq
        %v692 = vshrl.u32 %v691, 7
        %v693 = vsub.s32 0, %v692
        %v694 = vrot.slane %v479, %v693
        %v697 = vsel %vm570, %v685, 0
        %699 = vmatprep.subr.mxu0 0.0
        %700 = vmatpush1.msra.mxu0 0.0
        %701 = vmatprep.subr.mxu0 0.0
        %702 = vmatpush1.msra.mxu0 0.0
        %703 = vmatprep.subr.mxu0 0.0
        %704 = vmatpush1.msra.mxu0 0.0
        %705 = vmatprep.subr.mxu0 0.0
        %706 = vmatpush1.msra.mxu0 0.0
        %707 = vmatprep.subr.mxu0 0.0
        %708 = vmatpush1.msra.mxu0 0.0
        %709 = vmatprep.subr.mxu0 0.0
        %710 = vmatpush1.msra.mxu0 0.0
        %711 = vmatprep.subr.mxu0 0.0
        %712 = vmatpush1.msra.mxu0 0.0
        %713 = vmatprep.subr.mxu0 0.0
        %714 = vmatpush1.msra.mxu0 0.0
        %715 = vmatprep.subr.mxu0 0.0
        %716 = vmatpush1.msra.mxu0 0.0
        %717 = vmatprep.subr.mxu0 0.0
        %718 = vmatpush1.msra.mxu0 0.0
        %719 = vmatprep.subr.mxu0 0.0
        %720 = vmatpush1.msra.mxu0 0.0
        %721 = vmatprep.subr.mxu0 0.0
        %722 = vmatpush1.msra.mxu0 0.0
        %723 = vmatprep.subr.mxu0 0.0
        %724 = vmatpush1.msra.mxu0 %v689
        %725 = vmatprep.subr.mxu0 0.0
        %726 = vmatpush1.msra.mxu0 %v688
        %727 = vmatprep.subr.mxu0 0.0
        %728 = vmatpush1.msra.mxu0 %v687
        %729 = vmatprep.subr.mxu0 0.0
        %730 = vmatpush1.msra.mxu0 %v686
        %731 = vmatprep.subr.mxu0 0.0
        %732 = vmatpush2.msra.mxu0 0.0
        %733 = vmatprep.subr.mxu0 0.0
        %734 = vmatpush2.msra.mxu0 0.0
        %735 = vmatprep.subr.mxu0 0.0
        %736 = vmatpush2.msra.mxu0 0.0
        %737 = vmatprep.subr.mxu0 0.0
        %738 = vmatpush2.msra.mxu0 0.0
        %739 = vmatprep.subr.mxu0 0.0
        %740 = vmatpush2.msra.mxu0 0.0
        %741 = vmatprep.subr.mxu0 0.0
        %742 = vmatpush2.msra.mxu0 0.0
        %743 = vmatprep.subr.mxu0 0.0
        %744 = vmatpush2.msra.mxu0 0.0
        %745 = vmatprep.subr.mxu0 0.0
        %746 = vmatpush2.msra.mxu0 0.0
        %747 = vmatprep.subr.mxu0 0.0
        %748 = vmatpush2.msra.mxu0 0.0
        %749 = vmatprep.subr.mxu0 0.0
        %750 = vmatpush2.msra.mxu0 0.0
        %751 = vmatprep.subr.mxu0 0.0
        %752 = vmatpush2.msra.mxu0 0.0
        %753 = vmatprep.subr.mxu0 0.0
        %754 = vmatpush2.msra.mxu0 0.0
        %755 = vmatprep.subr.mxu0 0.0
        %756 = vmatpush2.msra.mxu0 0.0
        %757 = vmatprep.subr.mxu0 0.0
        %758 = vmatpush2.msra.mxu0 0.0
        %759 = vmatprep.subr.mxu0 0.0
        %760 = vmatpush2.msra.mxu0 0.0
        %761 = vmatprep.subr.mxu0 0.0
        %762 = vmatpush2.msra.mxu0 0.0
        %763 = vmatprep.mubr.f32.mxu0 0.0
        %764 = vmatmul.mubr.f32.gmra.mxu0 %v697
        %v765 = vpop.f32.mrf.mxu0
        %v766 = vadd.f32 %v694, %v765
        %v767 = vpop.f32.mrf.mxu0
        %768 = vdwg.mxu0
        %v769 = vmax.f32 %v766, 0.0
        %v770 = vld [vmem:[%s7] sm:$0xff]
        %v771 = vld [vmem:[%s7 + $0x8] sm:$0xff]
        %v772 = vld [vmem:[%s7 + $0x10] sm:$0xff]
        %v773 = vld [vmem:[%s7 + $0x18] sm:$0xff]
        %v774 = vld [vmem:[%s7 + $0x20] sm:$0xff]
        %v775 = vld [vmem:[%s7 + $0x28] sm:$0xff]
        %v776 = vld [vmem:[%s7 + $0x30] sm:$0xff]
        %v777 = vld [vmem:[%s7 + $0x38] sm:$0xff]
        %v778 = vlaneseq
        %v779 = vshrl.u32 %v778, 7
        %v780 = vsub.s32 0, %v779
        %v781 = vrot.slane %v478, %v780
        %vm782 = vcmask 523264
        %v784 = vsel %vm782, %v769, 0
        %786 = vmatprep.subr.mxu0 0.0
        %787 = vmatpush1.msra.mxu0 0.0
        %788 = vmatprep.subr.mxu0 0.0
        %789 = vmatpush1.msra.mxu0 0.0
        %790 = vmatprep.subr.mxu0 0.0
        %791 = vmatpush1.msra.mxu0 0.0
        %792 = vmatprep.subr.mxu0 0.0
        %793 = vmatpush1.msra.mxu0 0.0
        %794 = vmatprep.subr.mxu0 0.0
        %795 = vmatpush1.msra.mxu0 0.0
        %796 = vmatprep.subr.mxu0 0.0
        %797 = vmatpush1.msra.mxu0 0.0
        %798 = vmatprep.subr.mxu0 0.0
        %799 = vmatpush1.msra.mxu0 0.0
        %800 = vmatprep.subr.mxu0 0.0
        %801 = vmatpush1.msra.mxu0 0.0
        %802 = vmatprep.subr.mxu0 0.0
        %803 = vmatpush1.msra.mxu0 %v777
        %804 = vmatprep.subr.mxu0 0.0
        %805 = vmatpush1.msra.mxu0 %v776
        %806 = vmatprep.subr.mxu0 0.0
        %807 = vmatpush1.msra.mxu0 %v775
        %808 = vmatprep.subr.mxu0 0.0
        %809 = vmatpush1.msra.mxu0 %v774
        %810 = vmatprep.subr.mxu0 0.0
        %811 = vmatpush1.msra.mxu0 %v773
        %812 = vmatprep.subr.mxu0 0.0
        %813 = vmatpush1.msra.mxu0 %v772
        %814 = vmatprep.subr.mxu0 0.0
        %815 = vmatpush1.msra.mxu0 %v771
        %816 = vmatprep.subr.mxu0 0.0
        %817 = vmatpush1.msra.mxu0 %v770
        %818 = vmatprep.subr.mxu0 0.0
        %819 = vmatpush2.msra.mxu0 0.0
        %820 = vmatprep.subr.mxu0 0.0
        %821 = vmatpush2.msra.mxu0 0.0
        %822 = vmatprep.subr.mxu0 0.0
        %823 = vmatpush2.msra.mxu0 0.0
        %824 = vmatprep.subr.mxu0 0.0
        %825 = vmatpush2.msra.mxu0 0.0
        %826 = vmatprep.subr.mxu0 0.0
        %827 = vmatpush2.msra.mxu0 0.0
        %828 = vmatprep.subr.mxu0 0.0
        %829 = vmatpush2.msra.mxu0 0.0
        %830 = vmatprep.subr.mxu0 0.0
        %831 = vmatpush2.msra.mxu0 0.0
        %832 = vmatprep.subr.mxu0 0.0
        %833 = vmatpush2.msra.mxu0 0.0
        %834 = vmatprep.subr.mxu0 0.0
        %835 = vmatpush2.msra.mxu0 0.0
        %836 = vmatprep.subr.mxu0 0.0
        %837 = vmatpush2.msra.mxu0 0.0
        %838 = vmatprep.subr.mxu0 0.0
        %839 = vmatpush2.msra.mxu0 0.0
        %840 = vmatprep.subr.mxu0 0.0
        %841 = vmatpush2.msra.mxu0 0.0
        %842 = vmatprep.subr.mxu0 0.0
        %843 = vmatpush2.msra.mxu0 0.0
        %844 = vmatprep.subr.mxu0 0.0
        %845 = vmatpush2.msra.mxu0 0.0
        %846 = vmatprep.subr.mxu0 0.0
        %847 = vmatpush2.msra.mxu0 0.0
        %848 = vmatprep.subr.mxu0 0.0
        %849 = vmatpush2.msra.mxu0 0.0
        %850 = vmatprep.mubr.f32.mxu0 0.0
        %851 = vmatmul.mubr.f32.gmra.mxu0 %v784
        %v852 = vpop.f32.mrf.mxu0
        %v853 = vadd.f32 %v781, %v852
        %v854 = vpop.f32.mrf.mxu0
        %855 = vdwg.mxu0
        %v856 = vadd.f32 %v685, %v853
        %v857 = vsel %vm570, %v856, 0.0
        %858 = vadd.xlane.f32.xlu0 %v857
        %v859 = vpop.xlane.xlu0 %858
        %v860 = vmul.f32 %v859, %v665
        %v861 = vsub.f32 %v856, %v860
        %v862 = vmul.f32 %v861, %v861
        %v863 = vsel %vm570, %v862, 0.0
        %864 = vadd.xlane.f32.xlu0 %v863
        %v865 = vpop.xlane.xlu0 %864
        %v866 = vmul.f32 %v865, %v665
        %v867 = vadd.f32 %v866, 1e-05
        %v868 = vrsqrt.pop %v867
        %v869 = vmul.f32 %v861, %v868
        %v870 = vlaneseq
        %v871 = vshrl.u32 %v870, 7
        %v872 = vsub.s32 0, %v871
        %v873 = vrot.slane %v476, %v872
        %v874 = vmul.f32 %v869, %v873
        %v875 = vlaneseq
        %v876 = vshrl.u32 %v875, 7
        %v877 = vsub.s32 0, %v876
        %v878 = vrot.slane %v477, %v877
        %v879 = vadd.f32 %v874, %v878
        %880 = vst.msk [vmem:[%s471] sm:$0xff] %vm570, %v879
        %s881 = sand.u32 %s275, 1
        %s882 = scalar_lea.sflag [#allocation6], %s881
        %s883 = sand.u32 %s275, 1
        %s884 = smul.addr %s883, 8
        %s885 = scalar_lea.vmem [#allocation13], %s884
        // Predicated region
        $region85: #{tpu_custom_call.1} parent=59 // pred_check
          %p886 = pneg %p285
        $region86: #{tpu_custom_call.1} parent=59 // pred_check_branch
          %888 = sbr.rel (%p886) target = $region88
        $region87: #{tpu_custom_call.1} parent=59 // pred_region
          %s890 = ssub.s32 128, 128
          %891 = vsyncadd %s882, %s890
          %s892 = sadd.s32 %s36, %s35
          %s893 = smul.addr %s892, 128
          %s894 = scalar_lea.hbm %s10, %s893
          %s896 = sshll.u32 %s885, 4
          %s897 = int_to_ptr.vmem [resolvable:$true] %s896
          %899 = dma.vmem_to_hbm [thread:$0]  %s897, 128, %s894, %s882
        $region88: #{tpu_custom_call.1} parent=59 // pred_fallthru
          _
      $region60: #{tpu_custom_call.1} parent=5 // pred_fallthru
        _
      %p900 = scmp.le.s32.totalorder 2, %s26
      // Predicated region
      $region89: #{tpu_custom_call.1} parent=5 // pred_check
        %p901 = pneg %p900
      $region90: #{tpu_custom_call.1} parent=5 // pred_check_branch
        %903 = sbr.rel (%p901) target = $region92
      $region91: #{tpu_custom_call.1} parent=5 // pred_region
        %s904 = ssub.s32 %s26, 2
        // Predicated region
        $region93: #{tpu_custom_call.1} parent=91 // pred_check
          %p905 = pneg %p291
        $region94: #{tpu_custom_call.1} parent=91 // pred_check_branch
          %907 = sbr.rel (%p905) target = $region96
        $region95: #{tpu_custom_call.1} parent=91 // pred_region
          %s908 = sand.u32 %s276, 1
          %s909 = scalar_lea.sflag [#allocation6], %s908
          %s910 = sand.u32 %s276, 1
          %s911 = smul.addr %s910, 8
          %s912 = scalar_lea.vmem [#allocation13], %s911
          %913 = dma.done %s909, 128
        $region96: #{tpu_custom_call.1} parent=91 // pred_fallthru
          _
      $region92: #{tpu_custom_call.1} parent=5 // pred_fallthru
        _
    $region6: #{tpu_custom_call.1} parent=1 // loop_footer
      %s30 = sadd.s32 1, %s26
    $region7: #{tpu_custom_call.1} parent=1 // loop_footer_branch
      %25 = sbr.rel target = $region3
    $region8: #{tpu_custom_call.1} parent=1 // loop_exit
      _
    %914 = vsyncpa [#allocation5], 1
    %s915 = scalar_lea.sflag [#allocation5], 1
    %916 = vsyncpa %s915, 1
    %917 = vsyncpa [#allocation8], 1
    %s918 = scalar_lea.sflag [#allocation8], 1
    %919 = vsyncpa %s918, 1
    %920 = vsyncpa [#allocation11], 1
    %921 = vsyncpa [#allocation6], 1
    %s922 = scalar_lea.sflag [#allocation6], 1
    %923 = vsyncpa %s922, 1

</llo_original>
